<compile_context>
chip_gen: v7x
topology: tpu7x:2x2x1
jax: 0.10.0
libtpu: 0.0.40
codegen_flags: <defaults>
</compile_context>

<pallas_src>
import functools

import jax
import jax.numpy as jnp
import numpy as np
from jax import lax
from jax.experimental import pallas as pl
from jax.experimental.pallas import tpu as pltpu


def _round_up(x, m):
    return ((x + m - 1) // m) * m


def _attn3d_kernel(xl_ref, xm_ref, xr_ref, mask_ref, w1s_ref, par_ref, y_ref,
                   *, tap_offsets, halo, feat, compute_dtype):
    """One (batch, spatial-tile) grid step.

    xl_ref / xm_ref / xr_ref : (1, C, HALO) / (1, C, T) / (1, C, HALO)
        left halo, tile, right halo of the flat channels-first volume
        (C on sublanes, flattened D*H*W on lanes).  Halo blocks are clamped at the
        volume boundary; their contents there only feed masked border outputs.
    mask_ref : (1, T)       nonzero where a valid 3x3x3 conv_1 output exists
    w1s_ref  : (27F, C)     conv_1 weights, tap-major stacked
    par_ref  : (2F+1, 1)    packed [b1 ; w2 ; b2]   (f32)
    y_ref    : (1, C, T)
    """
    x_tile = xm_ref[0]                                                # (C, T) f32
    t_len = x_tile.shape[-1]
    cd = compute_dtype

    # window = [left halo | tile | right halo] -> (C, T + 2*halo)
    win = jnp.concatenate(
        [xl_ref[0].astype(cd), x_tile.astype(cd), xr_ref[0].astype(cd)], axis=-1)

    # conv_1 as ONE stacked matmul on the unshifted window (f32 accumulation).
    G = jnp.dot(w1s_ref[...], win, preferred_element_type=jnp.float32)  # (27F, T+2h)

    # Accumulate the 27 lane-shifted (F, T) result slices; 3 partial accumulators,
    # initialized from the first slices (no zeros init, shorter dependence chains).
    accs = [None, None, None]
    for t, off in enumerate(tap_offsets):
        s = halo + off                                                # static, >= 0
        sl = G[t * feat:(t + 1) * feat, s:s + t_len]                  # (F, T) static view
        k = t % 3
        accs[k] = sl if accs[k] is None else accs[k] + sl
    g = accs[0] + accs[1] + accs[2]                                   # (F, T)

    par = par_ref[...]                                                # (2F+1, 1)
    b1 = par[0:feat]                                                  # (F, 1)
    w2 = par[feat:2 * feat]                                           # (F, 1)
    b2 = par[2 * feat:2 * feat + 1]                                   # (1, 1)

    g = jnp.maximum(g + b1, 0.0)                                      # ReLU
    # conv_2 (1x1x1, one output channel): VPU multiply + sublane reduce.
    z = jnp.sum(g * w2, axis=0, keepdims=True)                        # (1, T)
    # conv_2 zero-padding semantics: outside the valid conv_1 region the conv_2 input
    # is zero -> z = b2 there.  jnp.where (not mask*z) so garbage/Inf halo data can
    # never leak NaN into masked border positions.
    z = jnp.where(mask_ref[...] != 0.0, z, 0.0) + b2
    att = 0.5 * (jnp.tanh(0.5 * z) + 1.0)                             # stable sigmoid

    y_ref[0] = (x_tile * (att + 1.0)).astype(y_ref.dtype)             # y = x*att + x


def attention_block_3d(x, w1, b1, w2, b2, *, tile_p=1024,
                       compute_dtype=jnp.float32):
    """AttentionBlock3D forward.

    x  : (N, C, D, H, W) f32
    w1 : (3, 3, 3, C, F) conv_1 weight (F = C//2),  b1 : (F,)
    w2 : (F,)            conv_2 weight (1 out ch),  b2 : (1,)
    compute_dtype : dtype of the conv_1 matmul inputs (f32 exact, bf16 fast).
    """
    N, C, D, H, W = x.shape
    F = w1.shape[-1]
    P = D * H * W

    # Max |flat tap offset| of the 3x3x3 stencil; halo = lane-aligned stencil reach.
    padf = H * W + W + 1
    halo = _round_up(padf, 128)
    tile = max(halo, _round_up(min(tile_p, P), halo))     # lane-dense, multiple of halo
    n_tiles = pl.cdiv(P, tile)
    p_ceil = n_tiles * tile
    n_halo = pl.cdiv(P, halo)                             # halo-granularity block count
    r = tile // halo

    # ---- layout plumbing only: flatten spatial, NO full-volume padding copy ----
    x_flat = x.reshape(N, C, P)

    # interior mask (valid conv_1 region) as a lane-dense row; padding it is tiny.
    d_ok = (jnp.arange(D) >= 1) & (jnp.arange(D) <= D - 2)
    h_ok = (jnp.arange(H) >= 1) & (jnp.arange(H) <= H - 2)
    w_ok = (jnp.arange(W) >= 1) & (jnp.arange(W) <= W - 2)
    interior = (d_ok[:, None, None] & h_ok[None, :, None] & w_ok[None, None, :]).reshape(1, P)
    mask = jnp.pad(interior.astype(jnp.float32), ((0, 0), (0, p_ceil - P)))

    # conv_1 weights stacked tap-major: row t*F + f = w1[kd, kh, kw, :, f]
    w1s = jnp.transpose(w1.reshape(27, C, F), (0, 2, 1)).reshape(27 * F, C)
    w1s = w1s.astype(compute_dtype)
    # tiny params packed into one column: [b1 ; w2 ; b2]
    params = jnp.concatenate([b1, w2, b2]).reshape(2 * F + 1, 1).astype(jnp.float32)

    tap_offsets = tuple((kd - 1) * H * W + (kh - 1) * W + (kw - 1)
                        for kd in range(3) for kh in range(3) for kw in range(3))

    kernel = functools.partial(_attn3d_kernel, tap_offsets=tap_offsets, halo=halo,
                               feat=F, compute_dtype=compute_dtype)

    # ---- VMEM budget for this tile choice (double-buffered I/O + intermediates) ----
    wb = jnp.dtype(compute_dtype).itemsize
    win_l = tile + 2 * halo
    est = (2 * 2 * C * tile * 4           # x tile + y tile, double-buffered
           + 2 * 2 * C * halo * 4         # two halo blocks, double-buffered
           + 2 * tile * 4                 # mask
           + 2 * (27 * F * C * wb + (2 * F + 1) * 4)   # weights / params
           + C * win_l * (4 + wb)         # concat window (+ compute-dtype copy)
           + 27 * F * win_l * 4           # stacked matmul result G
           + 6 * F * tile * 4)            # partial accumulators / relu temp
    vmem_limit = int(min(100 * 1024 * 1024, max(32 * 1024 * 1024, 2 * est)))

    y_flat = pl.pallas_call(
        kernel,
        out_shape=jax.ShapeDtypeStruct((N, C, P), x.dtype),
        grid=(N, n_tiles),
        in_specs=[
            # left halo: lanes [j*tile - halo, j*tile), clamped at the volume start
            pl.BlockSpec((1, C, halo), lambda n, j: (n, 0, jnp.maximum(j * r - 1, 0))),
            # main tile: lanes [j*tile, (j+1)*tile)  (last block may be partial)
            pl.BlockSpec((1, C, tile), lambda n, j: (n, 0, j)),
            # right halo: lanes [(j+1)*tile, (j+1)*tile + halo), clamped at the end
            pl.BlockSpec((1, C, halo), lambda n, j: (n, 0, jnp.minimum((j + 1) * r,
                                                                       n_halo - 1))),
            pl.BlockSpec((1, tile), lambda n, j: (0, j)),              # interior mask
            pl.BlockSpec((27 * F, C), lambda n, j: (0, 0)),            # stacked conv_1 w
            pl.BlockSpec((2 * F + 1, 1), lambda n, j: (0, 0)),         # b1|w2|b2
        ],
        out_specs=pl.BlockSpec((1, C, tile), lambda n, j: (n, 0, j)),
        compiler_params=pltpu.CompilerParams(
            dimension_semantics=("parallel", "parallel"),
            vmem_limit_bytes=vmem_limit),
    )(x_flat, x_flat, x_flat, mask, w1s, params)

    return y_flat.reshape(N, C, D, H, W)


def attention_block_3d_reference(x, w1, b1, w2, b2):
    """Pure-JAX reference matching the PyTorch forward exactly."""
    w1_oidhw = jnp.transpose(w1, (4, 3, 0, 1, 2))                 # (F, C, 3, 3, 3)
    g = lax.conv_general_dilated(x, w1_oidhw, (1, 1, 1), 'VALID',
                                 dimension_numbers=('NCDHW', 'OIDHW', 'NCDHW'))
    g = jnp.maximum(g + b1.reshape(1, -1, 1, 1, 1), 0.0)
    w2_oidhw = w2.reshape(1, -1, 1, 1, 1)                         # (1, F, 1, 1, 1)
    a = lax.conv_general_dilated(g, w2_oidhw, (1, 1, 1),
                                 [(1, 1), (1, 1), (1, 1)],
                                 dimension_numbers=('NCDHW', 'OIDHW', 'NCDHW'))
    a = jax.nn.sigmoid(a + b2.reshape(1, 1, 1, 1, 1))
    return x * a + x


def _make_inputs(key, N, C, D, H, W):
    F = C // 2
    k1, k2, k3, k4, kx = jax.random.split(key, 5)
    w1 = jax.random.normal(k1, (3, 3, 3, C, F), jnp.float32) * 0.2
    b1 = jax.random.normal(k2, (F,), jnp.float32) * 0.1
    w2 = jax.random.normal(k3, (F,), jnp.float32) * 0.2
    b2 = jax.random.normal(k4, (1,), jnp.float32) * 0.1
    x = jax.random.normal(kx, (N, C, D, H, W), jnp.float32)
    return x, w1, b1, w2, b2


if __name__ == "__main__":
    key_a, key_b = jax.random.split(jax.random.PRNGKey(0))

    # Case 1: 8^3 volume with tile_p=256 -> two spatial tiles per batch (exercises
    # cross-tile halos and the clamped boundary halos), f32 matmul path.
    xa, w1a, b1a, w2a, b2a = _make_inputs(key_a, 2, 4, 8, 8, 8)
    y1 = jax.block_until_ready(attention_block_3d(xa, w1a, b1a, w2a, b2a, tile_p=256))
    y1_ref = jax.block_until_ready(attention_block_3d_reference(xa, w1a, b1a, w2a, b2a))
    np.testing.assert_allclose(np.asarray(y1), np.asarray(y1_ref), rtol=1e-3, atol=1e-3)

    # Case 2: odd spatial sizes (P=210, not a multiple of 128) -> partial edge blocks,
    # default tiling, f32 matmul path.
    xb, w1b, b1b, w2b, b2b = _make_inputs(key_b, 2, 4, 5, 6, 7)
    y2 = jax.block_until_ready(attention_block_3d(xb, w1b, b1b, w2b, b2b))
    y2_ref = jax.block_until_ready(attention_block_3d_reference(xb, w1b, b1b, w2b, b2b))
    np.testing.assert_allclose(np.asarray(y2), np.asarray(y2_ref), rtol=1e-3, atol=1e-3)

    # Case 3: bf16 tap-matmul inputs (f32 accumulation) — the perf option from the
    # review; numerics differ slightly from the f32 reference, so looser tolerance.
    y3 = jax.block_until_ready(
        attention_block_3d(xa, w1a, b1a, w2a, b2a, tile_p=256,
                           compute_dtype=jnp.bfloat16))
    np.testing.assert_allclose(np.asarray(y3), np.asarray(y1_ref), rtol=3e-2, atol=3e-2)

    print("KERNEL_OK")
</pallas_src>

<mosaic_0001>
module attributes {stable_mosaic.version = 11 : i64} {
  func.func @_attn3d_kernel(%arg0: i32, %arg1: i32, %arg2: memref<1x4x128xf32, #tpu.memory_space<vmem>>, %arg3: memref<1x4x256xf32, #tpu.memory_space<vmem>>, %arg4: memref<1x4x128xf32, #tpu.memory_space<vmem>>, %arg5: memref<1x256xf32, #tpu.memory_space<vmem>>, %arg6: memref<54x4xf32, #tpu.memory_space<vmem>>, %arg7: memref<5x1xf32, #tpu.memory_space<vmem>>, %arg8: memref<1x4x256xf32, #tpu.memory_space<vmem>>) attributes {dimension_semantics = [#tpu.dimension_semantics<parallel>, #tpu.dimension_semantics<parallel>], iteration_bounds = array<i64: 2, 2>, scalar_prefetch = 0 : i64, scratch_operands = 0 : i64, tpu.core_type = #tpu.core_type<tc>, window_params = [{transform_indices = @transform_0, window_bounds = array<i64: 1, 4, 128>}, {transform_indices = @transform_1, window_bounds = array<i64: 1, 4, 256>}, {transform_indices = @transform_2, window_bounds = array<i64: 1, 4, 128>}, {transform_indices = @transform_3, window_bounds = array<i64: 1, 256>}, {pipeline_mode = #tpu.pipeline_mode<synchronous>, transform_indices = @transform_4, window_bounds = array<i64: 54, 4>}, {pipeline_mode = #tpu.pipeline_mode<synchronous>, transform_indices = @transform_5, window_bounds = array<i64: 5, 1>}, {transform_indices = @transform_6, window_bounds = array<i64: 1, 4, 256>}]} {
    %c0 = arith.constant 0 : index
    %c0_0 = arith.constant 0 : index
    %c0_1 = arith.constant 0 : index
    %0 = vector.load %arg3[%c0, %c0_0, %c0_1] : memref<1x4x256xf32, #tpu.memory_space<vmem>>, vector<1x4x256xf32>
    %1 = vector.shape_cast %0 : vector<1x4x256xf32> to vector<4x256xf32>
    %c0_2 = arith.constant 0 : index
    %c0_3 = arith.constant 0 : index
    %c0_4 = arith.constant 0 : index
    %2 = vector.load %arg2[%c0_2, %c0_3, %c0_4] : memref<1x4x128xf32, #tpu.memory_space<vmem>>, vector<1x4x128xf32>
    %3 = vector.shape_cast %2 : vector<1x4x128xf32> to vector<4x128xf32>
    %c0_5 = arith.constant 0 : index
    %c0_6 = arith.constant 0 : index
    %c0_7 = arith.constant 0 : index
    %4 = vector.load %arg4[%c0_5, %c0_6, %c0_7] : memref<1x4x128xf32, #tpu.memory_space<vmem>>, vector<1x4x128xf32>
    %5 = vector.shape_cast %4 : vector<1x4x128xf32> to vector<4x128xf32>
    %6 = tpu.concatenate %3, %1, %5 in 1 : vector<4x128xf32>, vector<4x256xf32>, vector<4x128xf32> -> vector<4x512xf32>
    %c0_8 = arith.constant 0 : index
    %c0_9 = arith.constant 0 : index
    %7 = vector.load %arg6[%c0_8, %c0_9] : memref<54x4xf32, #tpu.memory_space<vmem>>, vector<54x4xf32>
    %cst = arith.constant dense<0.000000e+00> : vector<54x512xf32>
    %8 = tpu.matmul %7, %6, %cst {dimension_numbers = #tpu.dot_dimension_numbers<[1], [0], [0], [1], [0, 0, 1, 1], [], []>} : vector<54x4xf32>, vector<4x512xf32>, vector<54x512xf32> -> vector<54x512xf32>
    %9 = vector.extract_strided_slice %8 {offsets = [0, 55], sizes = [2, 256], strides = [1, 1]} : vector<54x512xf32> to vector<2x256xf32>
    %10 = vector.extract_strided_slice %8 {offsets = [2, 56], sizes = [2, 256], strides = [1, 1]} : vector<54x512xf32> to vector<2x256xf32>
    %11 = vector.extract_strided_slice %8 {offsets = [4, 57], sizes = [2, 256], strides = [1, 1]} : vector<54x512xf32> to vector<2x256xf32>
    %12 = vector.extract_strided_slice %8 {offsets = [6, 63], sizes = [2, 256], strides = [1, 1]} : vector<54x512xf32> to vector<2x256xf32>
    %13 = arith.addf %9, %12 : vector<2x256xf32>
    %14 = vector.extract_strided_slice %8 {offsets = [8, 64], sizes = [2, 256], strides = [1, 1]} : vector<54x512xf32> to vector<2x256xf32>
    %15 = arith.addf %10, %14 : vector<2x256xf32>
    %16 = vector.extract_strided_slice %8 {offsets = [10, 65], sizes = [2, 256], strides = [1, 1]} : vector<54x512xf32> to vector<2x256xf32>
    %17 = arith.addf %11, %16 : vector<2x256xf32>
    %18 = vector.extract_strided_slice %8 {offsets = [12, 71], sizes = [2, 256], strides = [1, 1]} : vector<54x512xf32> to vector<2x256xf32>
    %19 = arith.addf %13, %18 : vector<2x256xf32>
    %20 = vector.extract_strided_slice %8 {offsets = [14, 72], sizes = [2, 256], strides = [1, 1]} : vector<54x512xf32> to vector<2x256xf32>
    %21 = arith.addf %15, %20 : vector<2x256xf32>
    %22 = vector.extract_strided_slice %8 {offsets = [16, 73], sizes = [2, 256], strides = [1, 1]} : vector<54x512xf32> to vector<2x256xf32>
    %23 = arith.addf %17, %22 : vector<2x256xf32>
    %24 = vector.extract_strided_slice %8 {offsets = [18, 119], sizes = [2, 256], strides = [1, 1]} : vector<54x512xf32> to vector<2x256xf32>
    %25 = arith.addf %19, %24 : vector<2x256xf32>
    %26 = vector.extract_strided_slice %8 {offsets = [20, 120], sizes = [2, 256], strides = [1, 1]} : vector<54x512xf32> to vector<2x256xf32>
    %27 = arith.addf %21, %26 : vector<2x256xf32>
    %28 = vector.extract_strided_slice %8 {offsets = [22, 121], sizes = [2, 256], strides = [1, 1]} : vector<54x512xf32> to vector<2x256xf32>
    %29 = arith.addf %23, %28 : vector<2x256xf32>
    %30 = vector.extract_strided_slice %8 {offsets = [24, 127], sizes = [2, 256], strides = [1, 1]} : vector<54x512xf32> to vector<2x256xf32>
    %31 = arith.addf %25, %30 : vector<2x256xf32>
    %32 = vector.extract_strided_slice %8 {offsets = [26, 128], sizes = [2, 256], strides = [1, 1]} : vector<54x512xf32> to vector<2x256xf32>
    %33 = arith.addf %27, %32 : vector<2x256xf32>
    %34 = vector.extract_strided_slice %8 {offsets = [28, 129], sizes = [2, 256], strides = [1, 1]} : vector<54x512xf32> to vector<2x256xf32>
    %35 = arith.addf %29, %34 : vector<2x256xf32>
    %36 = vector.extract_strided_slice %8 {offsets = [30, 135], sizes = [2, 256], strides = [1, 1]} : vector<54x512xf32> to vector<2x256xf32>
    %37 = arith.addf %31, %36 : vector<2x256xf32>
    %38 = vector.extract_strided_slice %8 {offsets = [32, 136], sizes = [2, 256], strides = [1, 1]} : vector<54x512xf32> to vector<2x256xf32>
    %39 = arith.addf %33, %38 : vector<2x256xf32>
    %40 = vector.extract_strided_slice %8 {offsets = [34, 137], sizes = [2, 256], strides = [1, 1]} : vector<54x512xf32> to vector<2x256xf32>
    %41 = arith.addf %35, %40 : vector<2x256xf32>
    %42 = vector.extract_strided_slice %8 {offsets = [36, 183], sizes = [2, 256], strides = [1, 1]} : vector<54x512xf32> to vector<2x256xf32>
    %43 = arith.addf %37, %42 : vector<2x256xf32>
    %44 = vector.extract_strided_slice %8 {offsets = [38, 184], sizes = [2, 256], strides = [1, 1]} : vector<54x512xf32> to vector<2x256xf32>
    %45 = arith.addf %39, %44 : vector<2x256xf32>
    %46 = vector.extract_strided_slice %8 {offsets = [40, 185], sizes = [2, 256], strides = [1, 1]} : vector<54x512xf32> to vector<2x256xf32>
    %47 = arith.addf %41, %46 : vector<2x256xf32>
    %48 = vector.extract_strided_slice %8 {offsets = [42, 191], sizes = [2, 256], strides = [1, 1]} : vector<54x512xf32> to vector<2x256xf32>
    %49 = arith.addf %43, %48 : vector<2x256xf32>
    %50 = vector.extract_strided_slice %8 {offsets = [44, 192], sizes = [2, 256], strides = [1, 1]} : vector<54x512xf32> to vector<2x256xf32>
    %51 = arith.addf %45, %50 : vector<2x256xf32>
    %52 = vector.extract_strided_slice %8 {offsets = [46, 193], sizes = [2, 256], strides = [1, 1]} : vector<54x512xf32> to vector<2x256xf32>
    %53 = arith.addf %47, %52 : vector<2x256xf32>
    %54 = vector.extract_strided_slice %8 {offsets = [48, 199], sizes = [2, 256], strides = [1, 1]} : vector<54x512xf32> to vector<2x256xf32>
    %55 = arith.addf %49, %54 : vector<2x256xf32>
    %56 = vector.extract_strided_slice %8 {offsets = [50, 200], sizes = [2, 256], strides = [1, 1]} : vector<54x512xf32> to vector<2x256xf32>
    %57 = arith.addf %51, %56 : vector<2x256xf32>
    %58 = vector.extract_strided_slice %8 {offsets = [52, 201], sizes = [2, 256], strides = [1, 1]} : vector<54x512xf32> to vector<2x256xf32>
    %59 = arith.addf %53, %58 : vector<2x256xf32>
    %60 = arith.addf %55, %57 : vector<2x256xf32>
    %61 = arith.addf %60, %59 : vector<2x256xf32>
    %c0_10 = arith.constant 0 : index
    %c0_11 = arith.constant 0 : index
    %62 = vector.load %arg7[%c0_10, %c0_11] : memref<5x1xf32, #tpu.memory_space<vmem>>, vector<5x1xf32>
    %63 = vector.extract_strided_slice %62 {offsets = [0, 0], sizes = [2, 1], strides = [1, 1]} : vector<5x1xf32> to vector<2x1xf32>
    %64 = vector.extract_strided_slice %62 {offsets = [2, 0], sizes = [2, 1], strides = [1, 1]} : vector<5x1xf32> to vector<2x1xf32>
    %65 = vector.extract_strided_slice %62 {offsets = [4, 0], sizes = [1, 1], strides = [1, 1]} : vector<5x1xf32> to vector<1x1xf32>
    %66 = vector.broadcast %63 : vector<2x1xf32> to vector<2x256xf32>
    %67 = arith.addf %61, %66 : vector<2x256xf32>
    %cst_12 = arith.constant 0.000000e+00 : f32
    %68 = vector.broadcast %cst_12 : f32 to vector<2x256xf32>
    %69 = arith.maximumf %67, %68 : vector<2x256xf32>
    %70 = vector.broadcast %64 : vector<2x1xf32> to vector<2x256xf32>
    %71 = arith.mulf %69, %70 : vector<2x256xf32>
    %cst_13 = arith.constant dense<0.000000e+00> : vector<256xf32>
    %72 = vector.multi_reduction <add>, %71, %cst_13 [0] : vector<2x256xf32> to vector<256xf32>
    %73 = vector.shape_cast %72 : vector<256xf32> to vector<1x256xf32>
    %c0_14 = arith.constant 0 : index
    %c0_15 = arith.constant 0 : index
    %74 = vector.load %arg5[%c0_14, %c0_15] : memref<1x256xf32, #tpu.memory_space<vmem>>, vector<1x256xf32>
    %cst_16 = arith.constant 0.000000e+00 : f32
    %75 = vector.broadcast %cst_16 : f32 to vector<1x256xf32>
    %76 = arith.cmpf one, %74, %75 : vector<1x256xf32>
    %cst_17 = arith.constant 0.000000e+00 : f32
    %77 = vector.broadcast %cst_17 : f32 to vector<1x256xf32>
    %78 = arith.select %76, %73, %77 : vector<1x256xi1>, vector<1x256xf32>
    %79 = vector.broadcast %65 : vector<1x1xf32> to vector<1x256xf32>
    %80 = arith.addf %78, %79 : vector<1x256xf32>
    %cst_18 = arith.constant 5.000000e-01 : f32
    %81 = vector.broadcast %cst_18 : f32 to vector<1x256xf32>
    %82 = arith.mulf %81, %80 : vector<1x256xf32>
    %83 = math.tanh %82 : vector<1x256xf32>
    %cst_19 = arith.constant 1.000000e+00 : f32
    %84 = vector.broadcast %cst_19 : f32 to vector<1x256xf32>
    %85 = arith.addf %83, %84 : vector<1x256xf32>
    %cst_20 = arith.constant 5.000000e-01 : f32
    %86 = vector.broadcast %cst_20 : f32 to vector<1x256xf32>
    %87 = arith.mulf %86, %85 : vector<1x256xf32>
    %cst_21 = arith.constant 1.000000e+00 : f32
    %88 = vector.broadcast %cst_21 : f32 to vector<1x256xf32>
    %89 = arith.addf %87, %88 : vector<1x256xf32>
    %90 = vector.broadcast %89 : vector<1x256xf32> to vector<4x256xf32>
    %91 = arith.mulf %1, %90 : vector<4x256xf32>
    %c0_22 = arith.constant 0 : index
    %c0_23 = arith.constant 0 : index
    %c0_24 = arith.constant 0 : index
    %92 = vector.load %arg8[%c0_22, %c0_23, %c0_24] : memref<1x4x256xf32, #tpu.memory_space<vmem>>, vector<1x4x256xf32>
    %93 = vector.shape_cast %92 : vector<1x4x256xf32> to vector<4x256xf32>
    %94 = vector.shape_cast %91 : vector<4x256xf32> to vector<1x4x256xf32>
    tpu.vector_store %arg8[%c0_22, %c0_23, %c0_24], %94 {strides = array<i32>} : memref<1x4x256xf32, #tpu.memory_space<vmem>>, vector<1x4x256xf32>,
    return
  }
  func.func @transform_0(%arg0: i32, %arg1: i32) -> (i32, i32, i32) {
    %c2_i32 = arith.constant 2 : i32
    %0 = arith.muli %arg1, %c2_i32 : i32
    %c1_i32 = arith.constant 1 : i32
    %1 = arith.subi %0, %c1_i32 : i32
    %c0_i32 = arith.constant 0 : i32
    %2 = arith.maxsi %1, %c0_i32 : i32
    %c0_i32_0 = arith.constant 0 : i32
    %c0_i32_1 = arith.constant 0 : i32
    return %arg0, %c0_i32_0, %2 : i32, i32, i32
  }
  func.func @transform_1(%arg0: i32, %arg1: i32) -> (i32, i32, i32) {
    %c0_i32 = arith.constant 0 : i32
    %c0_i32_0 = arith.constant 0 : i32
    return %arg0, %c0_i32, %arg1 : i32, i32, i32
  }
  func.func @transform_2(%arg0: i32, %arg1: i32) -> (i32, i32, i32) {
    %c1_i32 = arith.constant 1 : i32
    %0 = arith.addi %arg1, %c1_i32 : i32
    %c2_i32 = arith.constant 2 : i32
    %1 = arith.muli %0, %c2_i32 : i32
    %c3_i32 = arith.constant 3 : i32
    %2 = arith.minsi %1, %c3_i32 : i32
    %c0_i32 = arith.constant 0 : i32
    %c0_i32_0 = arith.constant 0 : i32
    return %arg0, %c0_i32, %2 : i32, i32, i32
  }
  func.func @transform_3(%arg0: i32, %arg1: i32) -> (i32, i32) {
    %c0_i32 = arith.constant 0 : i32
    %c0_i32_0 = arith.constant 0 : i32
    return %c0_i32, %arg1 : i32, i32
  }
  func.func @transform_4(%arg0: i32, %arg1: i32) -> (i32, i32) {
    %c0_i32 = arith.constant 0 : i32
    %c0_i32_0 = arith.constant 0 : i32
    %c0_i32_1 = arith.constant 0 : i32
    return %c0_i32, %c0_i32_0 : i32, i32
  }
  func.func @transform_5(%arg0: i32, %arg1: i32) -> (i32, i32) {
    %c0_i32 = arith.constant 0 : i32
    %c0_i32_0 = arith.constant 0 : i32
    %c0_i32_1 = arith.constant 0 : i32
    return %c0_i32, %c0_i32_0 : i32, i32
  }
  func.func @transform_6(%arg0: i32, %arg1: i32) -> (i32, i32, i32) {
    %c0_i32 = arith.constant 0 : i32
    %c0_i32_0 = arith.constant 0 : i32
    return %arg0, %c0_i32, %arg1 : i32, i32, i32
  }
}

</mosaic_0001>

<llo_original>
// kernel: tpu_custom_call.1
$region0: #{tpu_custom_call.1}
  #allocation0 [shape = 'u32[]', space=smem, size = 0x4, offset = 0x4, fixed_abs, tag = 'smem constant byte address 0x4 - core index']
  #allocation1 [shape = 'u32[144,128]{1,0:T(1,128)}', space=vmem, size = 0x12000, scoped, tag = 'internal scratch']
  %s0 = inlined_call_operand.vmem [shape: f32[2,4,512], index: 0, kind: input, shape index: {}]
  %s1 = inlined_call_operand.vmem [shape: f32[2,4,512], index: 1, kind: input, shape index: {}]
  %s2 = inlined_call_operand.hbm [shape: f32[2,4,512], index: 2, kind: input, shape index: {}]
  %s3 = inlined_call_operand.vmem [shape: f32[1,512], index: 3, kind: input, shape index: {}]
  %s4 = inlined_call_operand.vmem [shape: f32[54,4], index: 4, kind: input, shape index: {}]
  %s5 = inlined_call_operand.vmem [shape: f32[5,1], index: 5, kind: input, shape index: {}]
  %s6 = inlined_call_operand.hbm [shape: f32[2,4,512], index: 6, kind: output, shape index: {}]
  %s7 = sld [smem:[#allocation0]]
  $region61: #{tpu_custom_call.1} parent=0
    _
  %s9 = ssub.s32 1, %s7
  %s10 = scalar_select 0, %s9, %s7
  $region1: #{tpu_custom_call.1} parent=0
    #allocation2 [shape = 'u8[4096]{0}', space=vmem, size = 0x1000, scoped, tag = 'input window, operand 2']
    #allocation3 [shape = 's32[2]{0}', space=sflag, size = 0x8, scoped, tag = 'scoped memory for tpu_custom_call.1']
    #allocation4 [shape = 's32[2]{0}', space=sflag, size = 0x8, scoped, tag = 'scoped memory for tpu_custom_call.1']
    #allocation5 [shape = 'u8[8192]{0}', space=vmem, size = 0x2000, scoped, tag = 'output window, operand 0']
    %11 = vsyncpa [#allocation3], 0
    %s12 = scalar_lea.sflag [#allocation3], 1
    %13 = vsyncpa %s12, 0
    %14 = vsyncpa [#allocation4], 0
    %s15 = scalar_lea.sflag [#allocation4], 1
    %16 = vsyncpa %s15, 0
    loop: start=0, step=1, limit=6
    $region2: #{tpu_custom_call.1} parent=1 // loop_pre_header
      _
    $region3: #{tpu_custom_call.1} parent=1 // loop_header
      %s18 = sphi 0, %s22
      %p19 = scmp.ge.s32.totalorder %s18, 6
      %s25 = sphi 0, %s37
      %s26 = sphi 0, %s33
      %s27 = sphi 0, %s25
      %s28 = sphi 0, %s26
      %s29 = sphi 0, %s27
      %s30 = sphi 0, %s28
      %s50 = sphi 0, %s52
      %s53 = sphi 0, %s50
      %s54 = sphi 0, %s53
      %s70 = sphi 0, %s54
      %s78 = sphi 0, %s80
      %s81 = sphi 0, %s78
      %s82 = sphi 0, %s81
      %s98 = sphi 0, %s82
      %s114 = sphi 0, %s116
      %s117 = sphi 0, %s114
      %s118 = sphi 0, %s117
      %s134 = sphi 0, %s118
      %s140 = sphi 0, %s142
      %s143 = sphi 0, %s140
      %s144 = sphi 0, %s143
      %s160 = sphi 0, %s144
      %s164 = sphi 0, %s164
      %s166 = sphi 0, %s164
      %s167 = sphi 0, %s166
      %s181 = sphi 0, %s167
      %s185 = sphi 0, %s185
      %s187 = sphi 0, %s185
      %s188 = sphi 0, %s187
      %s202 = sphi 0, %s188
      %s210 = sphi 0, %s212
      %s213 = sphi 0, %s210
      %s214 = sphi 0, %s213
      %s230 = sphi 0, %s214
    $region4: #{tpu_custom_call.1} parent=1 // loop_header_branch
      %21 = sbr.rel (%p19) target = $region8
    $region5: #{tpu_custom_call.1} parent=1 // loop_body
      %s23 = ssub.s32 %s18, 1
      %s24 = ssub.s32 %s18, 2
      %s31 = sadd.s32 1, %s26
      %p32 = scmp.ge.s32.totalorder %s31, 2
      %s33 = scalar_select %p32, 0, %s31
      %s34 = sadd.s32 1, %s25
      %s35 = scalar_select %p32, %s34, %s25
      %p36 = scmp.ge.s32.totalorder %s35, 2
      %s37 = scalar_select %p36, 0, %s35
      %s38 = smul.u32 %s26, 2
      %s39 = ssub.s32 %s38, 1
      %p40 = scmp.gt.s32.totalorder %s39, 0
      %s41 = scalar_select %p40, %s39, 0
      %s42 = smul.u32 %s33, 2
      %s43 = ssub.s32 %s42, 1
      %p44 = scmp.gt.s32.totalorder %s43, 0
      %s45 = scalar_select %p44, %s43, 0
      %s46 = ssub.s32 %s25, %s37
      %s47 = ssub.s32 %s41, %s45
      %s48 = sor.u32 %s46, %s47
      %p49 = scmp.eq.s32.totalorder %s48, 0
      %s51 = sadd.s32 %s50, 1
      %s52 = scalar_select %p49, %s50, %s51
      %p55 = pneg %p49
      %p56 = scmp.eq.s32.totalorder %s18, 3
      %p57 = por %p55, %p56
      %p58 = scmp.ne.s32.totalorder %s50, %s53
      %p59 = scmp.eq.s32.totalorder %s18, 0
      %p60 = por %p58, %p59
      %p61 = scmp.ne.s32.totalorder %s50, %s53
      %p62 = scmp.eq.s32.totalorder %s23, 3
      %p63 = por %p61, %p62
      %p64 = scmp.ne.s32.totalorder %s53, %s54
      %p65 = scmp.eq.s32.totalorder %s23, 0
      %p66 = por %p64, %p65
      %p67 = scmp.ne.s32.totalorder %s53, %s54
      %p68 = scmp.eq.s32.totalorder %s24, 3
      %p69 = por %p67, %p68
      %p71 = scmp.ne.s32.totalorder %s54, %s70
      %p72 = scmp.eq.s32.totalorder %s24, 0
      %p73 = por %p71, %p72
      %s74 = ssub.s32 %s25, %s37
      %s75 = ssub.s32 %s26, %s33
      %s76 = sor.u32 %s74, %s75
      %p77 = scmp.eq.s32.totalorder %s76, 0
      %s79 = sadd.s32 %s78, 1
      %s80 = scalar_select %p77, %s78, %s79
      %p83 = pneg %p77
      %p84 = scmp.eq.s32.totalorder %s18, 3
      %p85 = por %p83, %p84
      %p86 = scmp.ne.s32.totalorder %s78, %s81
      %p87 = scmp.eq.s32.totalorder %s18, 0
      %p88 = por %p86, %p87
      %p89 = scmp.ne.s32.totalorder %s78, %s81
      %p90 = scmp.eq.s32.totalorder %s23, 3
      %p91 = por %p89, %p90
      %p92 = scmp.ne.s32.totalorder %s81, %s82
      %p93 = scmp.eq.s32.totalorder %s23, 0
      %p94 = por %p92, %p93
      %p95 = scmp.ne.s32.totalorder %s81, %s82
      %p96 = scmp.eq.s32.totalorder %s24, 3
      %p97 = por %p95, %p96
      %p99 = scmp.ne.s32.totalorder %s82, %s98
      %p100 = scmp.eq.s32.totalorder %s24, 0
      %p101 = por %p99, %p100
      %s102 = sadd.s32 %s26, 1
      %s103 = smul.u32 %s102, 2
      %p104 = scmp.lt.s32.totalorder %s103, 3
      %s105 = scalar_select %p104, %s103, 3
      %s106 = sadd.s32 %s33, 1
      %s107 = smul.u32 %s106, 2
      %p108 = scmp.lt.s32.totalorder %s107, 3
      %s109 = scalar_select %p108, %s107, 3
      %s110 = ssub.s32 %s25, %s37
      %s111 = ssub.s32 %s105, %s109
      %s112 = sor.u32 %s110, %s111
      %p113 = scmp.eq.s32.totalorder %s112, 0
      %s115 = sadd.s32 %s114, 1
      %s116 = scalar_select %p113, %s114, %s115
      %p119 = pneg %p113
      %p120 = scmp.eq.s32.totalorder %s18, 3
      %p121 = por %p119, %p120
      %p122 = scmp.ne.s32.totalorder %s114, %s117
      %p123 = scmp.eq.s32.totalorder %s18, 0
      %p124 = por %p122, %p123
      %p125 = scmp.ne.s32.totalorder %s114, %s117
      %p126 = scmp.eq.s32.totalorder %s23, 3
      %p127 = por %p125, %p126
      %p128 = scmp.ne.s32.totalorder %s117, %s118
      %p129 = scmp.eq.s32.totalorder %s23, 0
      %p130 = por %p128, %p129
      %p131 = scmp.ne.s32.totalorder %s117, %s118
      %p132 = scmp.eq.s32.totalorder %s24, 3
      %p133 = por %p131, %p132
      %p135 = scmp.ne.s32.totalorder %s118, %s134
      %p136 = scmp.eq.s32.totalorder %s24, 0
      %p137 = por %p135, %p136
      %s138 = ssub.s32 %s26, %s33
      %p139 = scmp.eq.s32.totalorder %s138, 0
      %s141 = sadd.s32 %s140, 1
      %s142 = scalar_select %p139, %s140, %s141
      %p145 = pneg %p139
      %p146 = scmp.eq.s32.totalorder %s18, 3
      %p147 = por %p145, %p146
      %p148 = scmp.ne.s32.totalorder %s140, %s143
      %p149 = scmp.eq.s32.totalorder %s18, 0
      %p150 = por %p148, %p149
      %p151 = scmp.ne.s32.totalorder %s140, %s143
      %p152 = scmp.eq.s32.totalorder %s23, 3
      %p153 = por %p151, %p152
      %p154 = scmp.ne.s32.totalorder %s143, %s144
      %p155 = scmp.eq.s32.totalorder %s23, 0
      %p156 = por %p154, %p155
      %p157 = scmp.ne.s32.totalorder %s143, %s144
      %p158 = scmp.eq.s32.totalorder %s24, 3
      %p159 = por %p157, %p158
      %p161 = scmp.ne.s32.totalorder %s144, %s160
      %p162 = scmp.eq.s32.totalorder %s24, 0
      %p163 = por %p161, %p162
      %s165 = sadd.s32 %s164, 1
      %p168 = scmp.eq.s32.totalorder %s18, 3
      %p169 = scmp.ne.s32.totalorder %s164, %s166
      %p170 = scmp.eq.s32.totalorder %s18, 0
      %p171 = por %p169, %p170
      %p172 = scmp.ne.s32.totalorder %s164, %s166
      %p173 = scmp.eq.s32.totalorder %s23, 3
      %p174 = por %p172, %p173
      %p175 = scmp.ne.s32.totalorder %s166, %s167
      %p176 = scmp.eq.s32.totalorder %s23, 0
      %p177 = por %p175, %p176
      %p178 = scmp.ne.s32.totalorder %s166, %s167
      %p179 = scmp.eq.s32.totalorder %s24, 3
      %p180 = por %p178, %p179
      %p182 = scmp.ne.s32.totalorder %s167, %s181
      %p183 = scmp.eq.s32.totalorder %s24, 0
      %p184 = por %p182, %p183
      %s186 = sadd.s32 %s185, 1
      %p189 = scmp.eq.s32.totalorder %s18, 3
      %p190 = scmp.ne.s32.totalorder %s185, %s187
      %p191 = scmp.eq.s32.totalorder %s18, 0
      %p192 = por %p190, %p191
      %p193 = scmp.ne.s32.totalorder %s185, %s187
      %p194 = scmp.eq.s32.totalorder %s23, 3
      %p195 = por %p193, %p194
      %p196 = scmp.ne.s32.totalorder %s187, %s188
      %p197 = scmp.eq.s32.totalorder %s23, 0
      %p198 = por %p196, %p197
      %p199 = scmp.ne.s32.totalorder %s187, %s188
      %p200 = scmp.eq.s32.totalorder %s24, 3
      %p201 = por %p199, %p200
      %p203 = scmp.ne.s32.totalorder %s188, %s202
      %p204 = scmp.eq.s32.totalorder %s24, 0
      %p205 = por %p203, %p204
      %s206 = ssub.s32 %s25, %s37
      %s207 = ssub.s32 %s26, %s33
      %s208 = sor.u32 %s206, %s207
      %p209 = scmp.eq.s32.totalorder %s208, 0
      %s211 = sadd.s32 %s210, 1
      %s212 = scalar_select %p209, %s210, %s211
      %p215 = pneg %p209
      %p216 = scmp.eq.s32.totalorder %s18, 3
      %p217 = por %p215, %p216
      %p218 = scmp.ne.s32.totalorder %s210, %s213
      %p219 = scmp.eq.s32.totalorder %s18, 0
      %p220 = por %p218, %p219
      %p221 = scmp.ne.s32.totalorder %s210, %s213
      %p222 = scmp.eq.s32.totalorder %s23, 3
      %p223 = por %p221, %p222
      %p224 = scmp.ne.s32.totalorder %s213, %s214
      %p225 = scmp.eq.s32.totalorder %s23, 0
      %p226 = por %p224, %p225
      %p227 = scmp.ne.s32.totalorder %s213, %s214
      %p228 = scmp.eq.s32.totalorder %s24, 3
      %p229 = por %p227, %p228
      %p231 = scmp.ne.s32.totalorder %s214, %s230
      %p232 = scmp.eq.s32.totalorder %s24, 0
      %p233 = por %p231, %p232
      %p234 = scmp.le.s32.totalorder 1, %s18
      %p235 = scmp.lt.s32.totalorder %s18, 5
      %p236 = pnand %p234, %p235
      %p237 = pneg %p236
      // Predicated region
      $region9: #{tpu_custom_call.1} parent=5 // pred_check
        _
      $region10: #{tpu_custom_call.1} parent=5 // pred_check_branch
        %239 = sbr.rel (%p236) target = $region12
      $region11: #{tpu_custom_call.1} parent=5 // pred_region
        %s240 = ssub.s32 %s18, 1
        // Predicated region
        $region13: #{tpu_custom_call.1} parent=11 // pred_check
          %p241 = pneg %p177
        $region14: #{tpu_custom_call.1} parent=11 // pred_check_branch
          %243 = sbr.rel (%p241) target = $region16
        $region15: #{tpu_custom_call.1} parent=11 // pred_region
          _
        $region16: #{tpu_custom_call.1} parent=11 // pred_fallthru
          _
        // Predicated region
        $region17: #{tpu_custom_call.1} parent=11 // pred_check
          %p244 = pneg %p198
        $region18: #{tpu_custom_call.1} parent=11 // pred_check_branch
          %246 = sbr.rel (%p244) target = $region20
        $region19: #{tpu_custom_call.1} parent=11 // pred_region
          _
        $region20: #{tpu_custom_call.1} parent=11 // pred_fallthru
          _
      $region12: #{tpu_custom_call.1} parent=5 // pred_fallthru
        _
      %p247 = scmp.lt.s32.totalorder %s18, 4
      // Predicated region
      $region21: #{tpu_custom_call.1} parent=5 // pred_check
        %p248 = pneg %p247
      $region22: #{tpu_custom_call.1} parent=5 // pred_check_branch
        %250 = sbr.rel (%p248) target = $region24
      $region23: #{tpu_custom_call.1} parent=5 // pred_region
        // Predicated region
        $region25: #{tpu_custom_call.1} parent=23 // pred_check
          %p251 = pneg %p60
        $region26: #{tpu_custom_call.1} parent=23 // pred_check_branch
          %253 = sbr.rel (%p251) target = $region28
        $region27: #{tpu_custom_call.1} parent=23 // pred_region
          %s254 = smul.u32 %s26, 2
          %s255 = ssub.s32 %s254, 1
          %p256 = scmp.gt.s32.totalorder %s255, 0
          %s257 = scalar_select %p256, %s255, 0
          %p258 = scmp.lt.s32.totalorder %s25, 1
          %s259 = scalar_select %p258, %s25, 1
          %p260 = scmp.lt.s32.totalorder %s257, 3
          %s261 = scalar_select %p260, %s257, 3
          %s262 = smul.addr %s259, 4
          %s263 = sadd.s32 %s261, %s262
          %s264 = smul.addr %s263, 4
          %s265 = scalar_lea.vmem %s0, %s264
          %s266 = smul.u32 %s26, 2
          %s267 = ssub.s32 %s266, 1
          %p268 = scmp.gt.s32.totalorder %s267, 0
          %s269 = scalar_select %p268, %s267, 0
        $region28: #{tpu_custom_call.1} parent=23 // pred_fallthru
          _
        // Predicated region
        $region29: #{tpu_custom_call.1} parent=23 // pred_check
          %p270 = pneg %p88
        $region30: #{tpu_custom_call.1} parent=23 // pred_check_branch
          %272 = sbr.rel (%p270) target = $region32
        $region31: #{tpu_custom_call.1} parent=23 // pred_region
          %s273 = smul.u32 2, %s26
          %p274 = scmp.lt.s32.totalorder %s25, 1
          %s275 = scalar_select %p274, %s25, 1
          %p276 = scmp.lt.s32.totalorder %s273, 3
          %s277 = scalar_select %p276, %s273, 3
          %s278 = smul.addr %s275, 4
          %s279 = sadd.s32 %s277, %s278
          %s280 = smul.addr %s279, 4
          %s281 = scalar_lea.vmem %s1, %s280
          %s282 = smul.u32 2, %s26
        $region32: #{tpu_custom_call.1} parent=23 // pred_fallthru
          _
        // Predicated region
        $region33: #{tpu_custom_call.1} parent=23 // pred_check
          %p283 = pneg %p124
        $region34: #{tpu_custom_call.1} parent=23 // pred_check_branch
          %285 = sbr.rel (%p283) target = $region36
        $region35: #{tpu_custom_call.1} parent=23 // pred_region
          %s286 = sand.u32 %s114, 1
          %s287 = scalar_lea.sflag [#allocation3], %s286
          %s288 = sand.u32 %s114, 1
          %s289 = smul.addr %s288, 4
          %s290 = scalar_lea.vmem [#allocation2], %s289
          %s291 = sadd.s32 %s26, 1
          %s292 = smul.u32 %s291, 2
          %p293 = scmp.lt.s32.totalorder %s292, 3
          %s294 = scalar_select %p293, %s292, 3
          %s296 = ssub.s32 64, 64
          %297 = vsyncadd %s287, %s296
          %s298 = smul.addr %s25, 4
          %s299 = sadd.s32 %s294, %s298
          %s300 = smul.addr %s299, 64
          %s301 = scalar_lea.hbm %s2, %s300
          %s303 = sshll.u32 %s290, 4
          %s304 = int_to_ptr.vmem [resolvable:$true] %s303
          %306 = dma.hbm_to_vmem [thread:$0]  %s301, 64, %s304, %s287
        $region36: #{tpu_custom_call.1} parent=23 // pred_fallthru
          _
        // Predicated region
        $region37: #{tpu_custom_call.1} parent=23 // pred_check
          %p307 = pneg %p150
        $region38: #{tpu_custom_call.1} parent=23 // pred_check_branch
          %309 = sbr.rel (%p307) target = $region40
        $region39: #{tpu_custom_call.1} parent=23 // pred_region
          %s310 = smul.u32 2, %s26
          %p311 = scmp.lt.s32.totalorder %s310, 3
          %s312 = scalar_select %p311, %s310, 3
          %s313 = scalar_lea.vmem %s3, %s312
          %s314 = smul.u32 2, %s26
        $region40: #{tpu_custom_call.1} parent=23 // pred_fallthru
          _
      $region24: #{tpu_custom_call.1} parent=5 // pred_fallthru
        _
      %p315 = scmp.le.s32.totalorder 1, %s18
      %p316 = scmp.lt.s32.totalorder %s18, 5
      %p317 = pnand %p315, %p316
      %p318 = pneg %p317
      // Predicated region
      $region41: #{tpu_custom_call.1} parent=5 // pred_check
        _
      $region42: #{tpu_custom_call.1} parent=5 // pred_check_branch
        %320 = sbr.rel (%p317) target = $region44
      $region43: #{tpu_custom_call.1} parent=5 // pred_region
        %s321 = ssub.s32 %s18, 1
        %s322 = sand.u32 %s117, 1
        %s323 = scalar_lea.sflag [#allocation3], %s322
        %s324 = sand.u32 %s117, 1
        %s325 = smul.addr %s324, 4
        %s326 = scalar_lea.vmem [#allocation2], %s325
        // Predicated region
        $region45: #{tpu_custom_call.1} parent=43 // pred_check
          %p327 = pneg %p130
        $region46: #{tpu_custom_call.1} parent=43 // pred_check_branch
          %329 = sbr.rel (%p327) target = $region48
        $region47: #{tpu_custom_call.1} parent=43 // pred_region
          %330 = dma.done %s323, 64
        $region48: #{tpu_custom_call.1} parent=43 // pred_fallthru
          _
        %s331 = smul.u32 %s28, 2
        %s332 = ssub.s32 %s331, 1
        %p333 = scmp.gt.s32.totalorder %s332, 0
        %s334 = scalar_select %p333, %s332, 0
        %p335 = scmp.lt.s32.totalorder %s27, 1
        %s336 = scalar_select %p335, %s27, 1
        %p337 = scmp.lt.s32.totalorder %s334, 3
        %s338 = scalar_select %p337, %s334, 3
        %s339 = smul.addr %s336, 4
        %s340 = sadd.s32 %s338, %s339
        %s341 = smul.addr %s340, 4
        %s342 = scalar_lea.vmem %s0, %s341
        %p343 = pneg %p66
        %p344 = pneg %p63
        %s345 = smul.u32 2, %s28
        %p346 = scmp.lt.s32.totalorder %s27, 1
        %s347 = scalar_select %p346, %s27, 1
        %p348 = scmp.lt.s32.totalorder %s345, 3
        %s349 = scalar_select %p348, %s345, 3
        %s350 = smul.addr %s347, 4
        %s351 = sadd.s32 %s349, %s350
        %s352 = smul.addr %s351, 4
        %s353 = scalar_lea.vmem %s1, %s352
        %p354 = pneg %p94
        %p355 = pneg %p91
        %s356 = sand.u32 %s117, 1
        %s357 = scalar_lea.sflag [#allocation3], %s356
        %s358 = sand.u32 %s117, 1
        %s359 = smul.addr %s358, 4
        %s360 = scalar_lea.vmem [#allocation2], %s359
        %p361 = pneg %p130
        %p362 = pneg %p127
        %s363 = smul.u32 2, %s28
        %p364 = scmp.lt.s32.totalorder %s363, 3
        %s365 = scalar_select %p364, %s363, 3
        %s366 = scalar_lea.vmem %s3, %s365
        %p367 = pneg %p156
        %p368 = pneg %p153
        %p369 = pneg %p177
        %p370 = pneg %p174
        %p371 = pneg %p198
        %p372 = pneg %p195
        %p373 = pneg %p226
        %p374 = pneg %p223
        %s375 = sand.u32 %s213, 1
        %s376 = scalar_lea.sflag [#allocation4], %s375
        %s377 = sand.u32 %s213, 1
        %s378 = smul.addr %s377, 8
        %s379 = scalar_lea.vmem [#allocation5], %s378
        %s380 = smul.u32 %s28, 2
        %s381 = ssub.s32 %s380, 1
        %p382 = scmp.gt.s32.totalorder %s381, 0
        %s383 = scalar_select %p382, %s381, 0
        %p384 = scmp.lt.s32.totalorder %s27, 1
        %s385 = scalar_select %p384, %s27, 1
        %p386 = scmp.lt.s32.totalorder %s383, 3
        %s387 = scalar_select %p386, %s383, 3
        %s388 = smul.addr %s385, 4
        %s389 = sadd.s32 %s387, %s388
        %s390 = smul.addr %s389, 4
        %s391 = scalar_lea.vmem %s0, %s390
        %s392 = smul.u32 %s28, 2
        %s393 = ssub.s32 %s392, 1
        %p394 = scmp.gt.s32.totalorder %s393, 0
        %s395 = scalar_select %p394, %s393, 0
        %s396 = smul.u32 2, %s28
        %p397 = scmp.lt.s32.totalorder %s27, 1
        %s398 = scalar_select %p397, %s27, 1
        %p399 = scmp.lt.s32.totalorder %s396, 3
        %s400 = scalar_select %p399, %s396, 3
        %s401 = smul.addr %s398, 4
        %s402 = sadd.s32 %s400, %s401
        %s403 = smul.addr %s402, 4
        %s404 = scalar_lea.vmem %s1, %s403
        %s405 = smul.u32 2, %s28
        %s406 = sadd.s32 %s28, 1
        %s407 = smul.u32 %s406, 2
        %p408 = scmp.lt.s32.totalorder %s407, 3
        %s409 = scalar_select %p408, %s407, 3
        %s410 = smul.u32 2, %s28
        %p411 = scmp.lt.s32.totalorder %s410, 3
        %s412 = scalar_select %p411, %s410, 3
        %s413 = scalar_lea.vmem %s3, %s412
        %s414 = smul.u32 2, %s28
        %s415 = smul.u32 2, %s28
        %v416 = vld [vmem:[%s404] sm:$0xff]
        %v417 = vld [vmem:[%s391] sm:$0xf]
        %v418 = vld [vmem:[%s326] sm:$0xf]
        %v420 = vcombine.high %v416, %v416
        %v421 = vld [vmem:[%s4] sm:$0xff]
        %v422 = vld [vmem:[%s4 + $0x8] sm:$0xff]
        %v423 = vld [vmem:[%s4 + $0x10] sm:$0xff]
        %v424 = vld [vmem:[%s4 + $0x18] sm:$0xff]
        %v425 = vld [vmem:[%s4 + $0x20] sm:$0xff]
        %v426 = vld [vmem:[%s4 + $0x28] sm:$0xff]
        %v427 = vld [vmem:[%s4 + $0x30] sm:$0x3f]
        %vm428 = vcmask 31744
        %v430 = vsel %vm428, %v421, 0
        %v433 = vsel %vm428, %v422, 0
        %v436 = vsel %vm428, %v423, 0
        %v439 = vsel %vm428, %v424, 0
        %v442 = vsel %vm428, %v425, 0
        %v445 = vsel %vm428, %v426, 0
        %v448 = vsel %vm428, %v427, 0
        %vm450 = vcmask 1043456
        %v452 = vsel %vm450, %v417, 0
        %v454 = vsel %vm450, %v416, 0
        %v456 = vsel %vm450, %v420, 0
        %v459 = vsel %vm450, %v418, 0
        %461 = vmatprep.subr.mxu0 %v454
        %462 = vmatpush1.msra.mxu0 %v452
        %463 = vmatprep.subr.mxu0 0.0
        %464 = vmatpush1.msra.mxu0 0.0
        %465 = vmatprep.subr.mxu0 0.0
        %466 = vmatpush1.msra.mxu0 0.0
        %467 = vmatprep.subr.mxu0 0.0
        %468 = vmatpush1.msra.mxu0 0.0
        %469 = vmatprep.subr.mxu0 0.0
        %470 = vmatpush1.msra.mxu0 0.0
        %471 = vmatprep.subr.mxu0 0.0
        %472 = vmatpush1.msra.mxu0 0.0
        %473 = vmatprep.subr.mxu0 0.0
        %474 = vmatpush1.msra.mxu0 0.0
        %475 = vmatprep.subr.mxu0 0.0
        %476 = vmatpush1.msra.mxu0 0.0
        %477 = vmatprep.subr.mxu0 0.0
        %478 = vmatpush1.msra.mxu0 0.0
        %479 = vmatprep.subr.mxu0 0.0
        %480 = vmatpush1.msra.mxu0 0.0
        %481 = vmatprep.subr.mxu0 0.0
        %482 = vmatpush1.msra.mxu0 0.0
        %483 = vmatprep.subr.mxu0 0.0
        %484 = vmatpush1.msra.mxu0 0.0
        %485 = vmatprep.subr.mxu0 0.0
        %486 = vmatpush1.msra.mxu0 0.0
        %487 = vmatprep.subr.mxu0 0.0
        %488 = vmatpush1.msra.mxu0 0.0
        %489 = vmatprep.subr.mxu0 0.0
        %490 = vmatpush1.msra.mxu0 0.0
        %491 = vmatprep.subr.mxu0 0.0
        %492 = vmatpush1.msra.mxu0 0.0
        %493 = vmatprep.subr.mxu0 0.0
        %494 = vmatpush1.msra.mxu0 0.0
        %495 = vmatprep.subr.mxu0 0.0
        %496 = vmatpush1.msra.mxu0 0.0
        %497 = vmatprep.subr.mxu0 0.0
        %498 = vmatpush1.msra.mxu0 0.0
        %499 = vmatprep.subr.mxu0 0.0
        %500 = vmatpush1.msra.mxu0 0.0
        %501 = vmatprep.subr.mxu0 0.0
        %502 = vmatpush1.msra.mxu0 0.0
        %503 = vmatprep.subr.mxu0 0.0
        %504 = vmatpush1.msra.mxu0 0.0
        %505 = vmatprep.subr.mxu0 0.0
        %506 = vmatpush1.msra.mxu0 0.0
        %507 = vmatprep.subr.mxu0 0.0
        %508 = vmatpush1.msra.mxu0 0.0
        %509 = vmatprep.subr.mxu0 0.0
        %510 = vmatpush1.msra.mxu0 0.0
        %511 = vmatprep.subr.mxu0 0.0
        %512 = vmatpush1.msra.mxu0 0.0
        %513 = vmatprep.subr.mxu0 0.0
        %514 = vmatpush1.msra.mxu0 0.0
        %515 = vmatprep.subr.mxu0 0.0
        %516 = vmatpush1.msra.mxu0 0.0
        %517 = vmatprep.subr.mxu0 0.0
        %518 = vmatpush1.msra.mxu0 0.0
        %519 = vmatprep.subr.mxu0 0.0
        %520 = vmatpush1.msra.mxu0 0.0
        %521 = vmatprep.subr.mxu0 0.0
        %522 = vmatpush1.msra.mxu0 0.0
        %523 = vmatprep.subr.mxu0 0.0
        %524 = vmatpush1.msra.mxu0 0.0
        %525 = vmatprep.mubr.f32.mxu0 0.0
        %526 = vmatmul.mubr.f32.gmra.mrb[0].mxu0 %v430
        %v527 = vpop.f32.mrb[0].mxu0
        %v528 = vadd.f32 0.0, %v527
        %v529 = vpop.f32.mrb[0].mxu0
        %v530 = vadd.f32 0.0, %v529
        %531 = vmatprep.mubr.f32.mxu0 0.0
        %532 = vmatmul.mubr.f32.gmra.mrb[0].mxu0 %v433
        %v533 = vpop.f32.mrb[0].mxu0
        %v534 = vadd.f32 0.0, %v533
        %v535 = vpop.f32.mrb[0].mxu0
        %v536 = vadd.f32 0.0, %v535
        %537 = vmatprep.mubr.f32.mxu0 0.0
        %538 = vmatmul.mubr.f32.gmra.mrb[0].mxu0 %v436
        %v539 = vpop.f32.mrb[0].mxu0
        %v540 = vadd.f32 0.0, %v539
        %v541 = vpop.f32.mrb[0].mxu0
        %v542 = vadd.f32 0.0, %v541
        %543 = vmatprep.mubr.f32.mxu0 0.0
        %544 = vmatmul.mubr.f32.gmra.mrb[0].mxu0 %v439
        %v545 = vpop.f32.mrb[0].mxu0
        %v546 = vadd.f32 0.0, %v545
        %v547 = vpop.f32.mrb[0].mxu0
        %v548 = vadd.f32 0.0, %v547
        %549 = vmatprep.mubr.f32.mxu0 0.0
        %550 = vmatmul.mubr.f32.gmra.mrb[0].mxu0 %v442
        %v551 = vpop.f32.mrb[0].mxu0
        %v552 = vpop.f32.mrb[0].mxu0
        %v553 = vadd.f32 0.0, %v552
        %554 = vmatprep.mubr.f32.mxu0 0.0
        %555 = vmatmul.mubr.f32.gmra.mrb[0].mxu0 %v445
        %v556 = vpop.f32.mrb[0].mxu0
        %v557 = vpop.f32.mrb[0].mxu0
        %v558 = vadd.f32 0.0, %v557
        %559 = vmatprep.mubr.f32.mxu0 0.0
        %560 = vmatmul.mubr.f32.gmra.mrb[0].mxu0 %v448
        %v561 = vpop.f32.mrb[0].mxu0
        %v562 = vpop.f32.mrb[0].mxu0
        %v563 = vadd.f32 0.0, %v562
        %564 = vdwg.mxu0
        %565 = vmatprep.subr.mxu0 %v459
        %566 = vmatpush1.msra.mxu0 %v456
        %567 = vmatprep.subr.mxu0 0.0
        %568 = vmatpush1.msra.mxu0 0.0
        %569 = vmatprep.subr.mxu0 0.0
        %570 = vmatpush1.msra.mxu0 0.0
        %571 = vmatprep.subr.mxu0 0.0
        %572 = vmatpush1.msra.mxu0 0.0
        %573 = vmatprep.subr.mxu0 0.0
        %574 = vmatpush1.msra.mxu0 0.0
        %575 = vmatprep.subr.mxu0 0.0
        %576 = vmatpush1.msra.mxu0 0.0
        %577 = vmatprep.subr.mxu0 0.0
        %578 = vmatpush1.msra.mxu0 0.0
        %579 = vmatprep.subr.mxu0 0.0
        %580 = vmatpush1.msra.mxu0 0.0
        %581 = vmatprep.subr.mxu0 0.0
        %582 = vmatpush1.msra.mxu0 0.0
        %583 = vmatprep.subr.mxu0 0.0
        %584 = vmatpush1.msra.mxu0 0.0
        %585 = vmatprep.subr.mxu0 0.0
        %586 = vmatpush1.msra.mxu0 0.0
        %587 = vmatprep.subr.mxu0 0.0
        %588 = vmatpush1.msra.mxu0 0.0
        %589 = vmatprep.subr.mxu0 0.0
        %590 = vmatpush1.msra.mxu0 0.0
        %591 = vmatprep.subr.mxu0 0.0
        %592 = vmatpush1.msra.mxu0 0.0
        %593 = vmatprep.subr.mxu0 0.0
        %594 = vmatpush1.msra.mxu0 0.0
        %595 = vmatprep.subr.mxu0 0.0
        %596 = vmatpush1.msra.mxu0 0.0
        %597 = vmatprep.subr.mxu0 0.0
        %598 = vmatpush1.msra.mxu0 0.0
        %599 = vmatprep.subr.mxu0 0.0
        %600 = vmatpush1.msra.mxu0 0.0
        %601 = vmatprep.subr.mxu0 0.0
        %602 = vmatpush1.msra.mxu0 0.0
        %603 = vmatprep.subr.mxu0 0.0
        %604 = vmatpush1.msra.mxu0 0.0
        %605 = vmatprep.subr.mxu0 0.0
        %606 = vmatpush1.msra.mxu0 0.0
        %607 = vmatprep.subr.mxu0 0.0
        %608 = vmatpush1.msra.mxu0 0.0
        %609 = vmatprep.subr.mxu0 0.0
        %610 = vmatpush1.msra.mxu0 0.0
        %611 = vmatprep.subr.mxu0 0.0
        %612 = vmatpush1.msra.mxu0 0.0
        %613 = vmatprep.subr.mxu0 0.0
        %614 = vmatpush1.msra.mxu0 0.0
        %615 = vmatprep.subr.mxu0 0.0
        %616 = vmatpush1.msra.mxu0 0.0
        %617 = vmatprep.subr.mxu0 0.0
        %618 = vmatpush1.msra.mxu0 0.0
        %619 = vmatprep.subr.mxu0 0.0
        %620 = vmatpush1.msra.mxu0 0.0
        %621 = vmatprep.subr.mxu0 0.0
        %622 = vmatpush1.msra.mxu0 0.0
        %623 = vmatprep.subr.mxu0 0.0
        %624 = vmatpush1.msra.mxu0 0.0
        %625 = vmatprep.subr.mxu0 0.0
        %626 = vmatpush1.msra.mxu0 0.0
        %627 = vmatprep.subr.mxu0 0.0
        %628 = vmatpush1.msra.mxu0 0.0
        %629 = vmatprep.mubr.f32.mxu0 0.0
        %630 = vmatmul.mubr.f32.gmra.mrb[0].mxu0 %v430
        %v631 = vpop.f32.mrb[0].mxu0
        %v632 = vadd.f32 0.0, %v631
        %v633 = vpop.f32.mrb[0].mxu0
        %634 = vmatprep.mubr.f32.mxu0 0.0
        %635 = vmatmul.mubr.f32.gmra.mrb[0].mxu0 %v433
        %v636 = vpop.f32.mrb[0].mxu0
        %v637 = vadd.f32 0.0, %v636
        %v638 = vpop.f32.mrb[0].mxu0
        %639 = vmatprep.mubr.f32.mxu0 0.0
        %640 = vmatmul.mubr.f32.gmra.mrb[0].mxu0 %v436
        %v641 = vpop.f32.mrb[0].mxu0
        %v642 = vadd.f32 0.0, %v641
        %v643 = vpop.f32.mrb[0].mxu0
        %644 = vmatprep.mubr.f32.mxu0 0.0
        %645 = vmatmul.mubr.f32.gmra.mrb[0].mxu0 %v439
        %v646 = vpop.f32.mrb[0].mxu0
        %v647 = vadd.f32 0.0, %v646
        %v648 = vpop.f32.mrb[0].mxu0
        %v649 = vadd.f32 0.0, %v648
        %650 = vmatprep.mubr.f32.mxu0 0.0
        %651 = vmatmul.mubr.f32.gmra.mrb[0].mxu0 %v442
        %v652 = vpop.f32.mrb[0].mxu0
        %v653 = vadd.f32 0.0, %v652
        %v654 = vpop.f32.mrb[0].mxu0
        %v655 = vadd.f32 0.0, %v654
        %656 = vmatprep.mubr.f32.mxu0 0.0
        %657 = vmatmul.mubr.f32.gmra.mrb[0].mxu0 %v445
        %v658 = vpop.f32.mrb[0].mxu0
        %v659 = vadd.f32 0.0, %v658
        %v660 = vpop.f32.mrb[0].mxu0
        %v661 = vadd.f32 0.0, %v660
        %662 = vmatprep.mubr.f32.mxu0 0.0
        %663 = vmatmul.mubr.f32.gmra.mrb[0].mxu0 %v448
        %v664 = vpop.f32.mrb[0].mxu0
        %v665 = vadd.f32 0.0, %v664
        %v666 = vpop.f32.mrb[0].mxu0
        %v667 = vadd.f32 0.0, %v666
        %668 = vdwg.mxu0
        %v672 = vrot.slane %v528, 6
        %v673 = vrot.slane %v530, 6
        %v674 = vrot.slane %v632, 6
        %675 = vrot.lane.b32.xlu0 %v672, 120
        %v676 = vpop.permute.xlu0 %675
        %677 = vrot.lane.b32.xlu0 %v673, 120
        %v678 = vpop.permute.xlu0 %677
        %679 = vrot.lane.b32.xlu0 %v674, 120
        %v680 = vpop.permute.xlu0 %679
        %vm681 = vcmask 982016
        %v682 = vsel %vm681, %v676, %v678
        %v683 = vsel %vm681, %v678, %v680
        %v687 = vadd.f32 %v528, %v682
        %v688 = vadd.f32 %v530, %v683
        %v689 = vadd.f32 %v632, %v680
        %v693 = vrot.slane %v534, 6
        %v694 = vrot.slane %v536, 6
        %v695 = vrot.slane %v637, 6
        %696 = vrot.lane.b32.xlu0 %v693, 120
        %v697 = vpop.permute.xlu0 %696
        %698 = vrot.lane.b32.xlu0 %v694, 120
        %v699 = vpop.permute.xlu0 %698
        %700 = vrot.lane.b32.xlu0 %v695, 120
        %v701 = vpop.permute.xlu0 %700
        %v702 = vsel %vm681, %v697, %v699
        %v703 = vsel %vm681, %v699, %v701
        %v707 = vadd.f32 %v528, %v702
        %v708 = vadd.f32 %v530, %v703
        %v709 = vadd.f32 %v632, %v701
        %v710 = vrot.slane %v534, 4
        %v711 = vrot.slane %v536, 4
        %v712 = vrot.slane %v637, 4
        %713 = vrot.lane.b32.xlu0 %v710, 112
        %v714 = vpop.permute.xlu0 %713
        %715 = vrot.lane.b32.xlu0 %v711, 112
        %v716 = vpop.permute.xlu0 %715
        %717 = vrot.lane.b32.xlu0 %v712, 112
        %v718 = vpop.permute.xlu0 %717
        %vm719 = vcmask 916480
        %v720 = vsel %vm719, %v714, %v716
        %v721 = vsel %vm719, %v716, %v718
        %v725 = vadd.f32 %v687, %v720
        %v726 = vadd.f32 %v688, %v721
        %v727 = vadd.f32 %v689, %v718
        %v728 = vadd.f32 %v707, %v720
        %v729 = vadd.f32 %v708, %v721
        %v730 = vadd.f32 %v709, %v718
        %v734 = vrot.slane %v540, 4
        %v735 = vrot.slane %v542, 4
        %v736 = vrot.slane %v642, 4
        %737 = vrot.lane.b32.xlu0 %v734, 112
        %v738 = vpop.permute.xlu0 %737
        %739 = vrot.lane.b32.xlu0 %v735, 112
        %v740 = vpop.permute.xlu0 %739
        %741 = vrot.lane.b32.xlu0 %v736, 112
        %v742 = vpop.permute.xlu0 %741
        %v743 = vsel %vm719, %v738, %v740
        %v744 = vsel %vm719, %v740, %v742
        %v748 = vadd.f32 %v707, %v743
        %v749 = vadd.f32 %v708, %v744
        %v750 = vadd.f32 %v709, %v742
        %v751 = vrot.slane %v540, 2
        %v752 = vrot.slane %v542, 2
        %v753 = vrot.slane %v642, 2
        %754 = vrot.lane.b32.xlu0 %v751, 64
        %v755 = vpop.permute.xlu0 %754
        %756 = vrot.lane.b32.xlu0 %v752, 64
        %v757 = vpop.permute.xlu0 %756
        %758 = vrot.lane.b32.xlu0 %v753, 64
        %v759 = vpop.permute.xlu0 %758
        %vm760 = vcmask 523264
        %v761 = vsel %vm760, %v755, %v757
        %v762 = vsel %vm760, %v757, %v759
        %v766 = vadd.f32 %v725, %v761
        %v767 = vadd.f32 %v726, %v762
        %v768 = vadd.f32 %v727, %v759
        %v769 = vadd.f32 %v728, %v761
        %v770 = vadd.f32 %v729, %v762
        %v771 = vadd.f32 %v730, %v759
        %v772 = vadd.f32 %v748, %v761
        %v773 = vadd.f32 %v749, %v762
        %v774 = vadd.f32 %v750, %v759
        %778 = vrot.lane.b32.xlu0 %v546, 56
        %v779 = vpop.permute.xlu0 %778
        %780 = vrot.lane.b32.xlu0 %v548, 56
        %v781 = vpop.permute.xlu0 %780
        %782 = vrot.lane.b32.xlu0 %v647, 56
        %v783 = vpop.permute.xlu0 %782
        %vm784 = vcmask 457728
        %v785 = vsel %vm784, %v779, %v781
        %v786 = vsel %vm784, %v781, %v783
        %v790 = vadd.f32 %v766, %v785
        %v791 = vadd.f32 %v767, %v786
        %v792 = vadd.f32 %v768, %v783
        %v794 = vadd.f32 %v769, %v781
        %v795 = vadd.f32 %v770, %v786
        %v796 = vadd.f32 %v771, %v783
        %798 = vrot.lane.b32.xlu0 %v649, 56
        %v799 = vpop.permute.xlu0 %798
        %v800 = vsel %vm784, %v783, %v799
        %v802 = vadd.f32 %v772, %v781
        %v803 = vadd.f32 %v773, %v786
        %v804 = vadd.f32 %v774, %v800
        %v805 = vrot.slane %v548, 6
        %v806 = vrot.slane %v647, 6
        %v807 = vrot.slane %v649, 6
        %808 = vrot.lane.b32.xlu0 %v805, 48
        %v809 = vpop.permute.xlu0 %808
        %810 = vrot.lane.b32.xlu0 %v806, 48
        %v811 = vpop.permute.xlu0 %810
        %812 = vrot.lane.b32.xlu0 %v807, 48
        %v813 = vpop.permute.xlu0 %812
        %vm814 = vcmask 392192
        %v815 = vsel %vm814, %v809, %v811
        %v816 = vsel %vm814, %v811, %v813
        %v820 = vadd.f32 %v790, %v809
        %v821 = vadd.f32 %v791, %v815
        %v822 = vadd.f32 %v792, %v816
        %v826 = vrot.slane %v553, 6
        %v827 = vrot.slane %v653, 6
        %v828 = vrot.slane %v655, 6
        %829 = vrot.lane.b32.xlu0 %v826, 48
        %v830 = vpop.permute.xlu0 %829
        %831 = vrot.lane.b32.xlu0 %v827, 48
        %v832 = vpop.permute.xlu0 %831
        %833 = vrot.lane.b32.xlu0 %v828, 48
        %v834 = vpop.permute.xlu0 %833
        %v835 = vsel %vm814, %v830, %v832
        %v836 = vsel %vm814, %v832, %v834
        %v840 = vadd.f32 %v794, %v830
        %v841 = vadd.f32 %v795, %v835
        %v842 = vadd.f32 %v796, %v836
        %v843 = vadd.f32 %v802, %v830
        %v844 = vadd.f32 %v803, %v835
        %v845 = vadd.f32 %v804, %v836
        %v846 = vrot.slane %v553, 4
        %v847 = vrot.slane %v653, 4
        %v848 = vrot.slane %v655, 4
        %v852 = vadd.f32 %v820, %v846
        %v853 = vadd.f32 %v821, %v847
        %v854 = vadd.f32 %v822, %v848
        %v855 = vadd.f32 %v840, %v846
        %v856 = vadd.f32 %v841, %v847
        %v857 = vadd.f32 %v842, %v848
        %v861 = vrot.slane %v558, 4
        %v862 = vrot.slane %v659, 4
        %v863 = vrot.slane %v661, 4
        %v867 = vadd.f32 %v843, %v861
        %v868 = vadd.f32 %v844, %v862
        %v869 = vadd.f32 %v845, %v863
        %v870 = vrot.slane %v558, 2
        %v871 = vrot.slane %v659, 2
        %v872 = vrot.slane %v661, 2
        %873 = vrot.lane.b32.xlu0 %v870, 120
        %v874 = vpop.permute.xlu0 %873
        %875 = vrot.lane.b32.xlu0 %v871, 120
        %v876 = vpop.permute.xlu0 %875
        %877 = vrot.lane.b32.xlu0 %v872, 120
        %v878 = vpop.permute.xlu0 %877
        %v879 = vsel %vm681, %v874, %v876
        %v880 = vsel %vm681, %v876, %v878
        %v884 = vadd.f32 %v852, %v879
        %v885 = vadd.f32 %v853, %v880
        %v886 = vadd.f32 %v854, %v878
        %v887 = vadd.f32 %v855, %v879
        %v888 = vadd.f32 %v856, %v880
        %v889 = vadd.f32 %v857, %v878
        %v890 = vadd.f32 %v867, %v879
        %v891 = vadd.f32 %v868, %v880
        %v892 = vadd.f32 %v869, %v878
        %896 = vrot.lane.b32.xlu0 %v563, 112
        %v897 = vpop.permute.xlu0 %896
        %898 = vrot.lane.b32.xlu0 %v665, 112
        %v899 = vpop.permute.xlu0 %898
        %900 = vrot.lane.b32.xlu0 %v667, 112
        %v901 = vpop.permute.xlu0 %900
        %v902 = vsel %vm719, %v897, %v899
        %v903 = vsel %vm719, %v899, %v901
        %v907 = vadd.f32 %v884, %v902
        %v908 = vadd.f32 %v885, %v903
        %v909 = vadd.f32 %v886, %v901
        %v910 = vadd.f32 %v887, %v902
        %v911 = vadd.f32 %v888, %v903
        %v912 = vadd.f32 %v889, %v901
        %v913 = vadd.f32 %v890, %v902
        %v914 = vadd.f32 %v891, %v903
        %v915 = vadd.f32 %v892, %v901
        %v919 = vrot.slane %v910, 2
        %v920 = vrot.slane %v911, 2
        %v921 = vrot.slane %v912, 2
        %922 = vrot.lane.b32.xlu0 %v919, 127
        %v923 = vpop.permute.xlu0 %922
        %924 = vrot.lane.b32.xlu0 %v920, 127
        %v925 = vpop.permute.xlu0 %924
        %926 = vrot.lane.b32.xlu0 %v921, 127
        %v927 = vpop.permute.xlu0 %926
        %vm928 = vcmask 1039360
        %v929 = vsel %vm928, %v923, %v925
        %v930 = vsel %vm928, %v925, %v927
        %v934 = vadd.f32 %v907, %v929
        %v935 = vadd.f32 %v908, %v930
        %v936 = vadd.f32 %v909, %v927
        %v940 = vrot.slane %v913, 4
        %v941 = vrot.slane %v914, 4
        %v942 = vrot.slane %v915, 4
        %943 = vrot.lane.b32.xlu0 %v940, 126
        %v944 = vpop.permute.xlu0 %943
        %945 = vrot.lane.b32.xlu0 %v941, 126
        %v946 = vpop.permute.xlu0 %945
        %947 = vrot.lane.b32.xlu0 %v942, 126
        %v948 = vpop.permute.xlu0 %947
        %vm949 = vcmask 1031168
        %v950 = vsel %vm949, %v944, %v946
        %v951 = vsel %vm949, %v946, %v948
        %v955 = vadd.f32 %v934, %v950
        %v956 = vadd.f32 %v935, %v951
        %v957 = vadd.f32 %v936, %v948
        %v958 = vld [vmem:[%s5] sm:$0x1f]
        %960 = vset.pattern.permute.xlu0 0
        %961 = vperm.xlu0 %960, %v958
        %v962 = vpop.permute.xlu0 %961
        %v964 = vadd.f32 %v955, %v962
        %v965 = vadd.f32 %v956, %v962
        %v966 = vadd.f32 %v957, %v962
        %v967 = vmax.f32 %v964, 0.0
        %v968 = vmax.f32 %v965, 0.0
        %v969 = vmax.f32 %v966, 0.0
        %v970 = vrot.slane %v962, 2
        %v972 = vmul.f32 %v967, %v970
        %v973 = vmul.f32 %v968, %v970
        %v974 = vmul.f32 %v969, %v970
        %vm975 = vcmask 1041848
        %v976 = vsel %vm975, %v972, 0.0
        %v977 = vrot.slane %v976, 4
        %v978 = vadd.f32 %v976, %v977
        %v979 = vrot.slane %v978, 2
        %v980 = vadd.f32 %v978, %v979
        %v981 = vrot.slane %v980, 1
        %v982 = vadd.f32 %v980, %v981
        %vm983 = vcmask 1041408
        %v984 = vsel %vm983, %v973, 0.0
        %v985 = vrot.slane %v984, 4
        %v986 = vadd.f32 %v984, %v985
        %v987 = vrot.slane %v986, 2
        %v988 = vadd.f32 %v986, %v987
        %v989 = vrot.slane %v988, 1
        %v990 = vadd.f32 %v988, %v989
        %vm991 = vcmask 443392
        %v992 = vsel %vm991, %v974, 0.0
        %v993 = vrot.slane %v992, 4
        %v994 = vadd.f32 %v992, %v993
        %v995 = vrot.slane %v994, 2
        %v996 = vadd.f32 %v994, %v995
        %v997 = vrot.slane %v996, 1
        %v998 = vadd.f32 %v996, %v997
        %v999 = vld [vmem:[%s413] sm:$0x3]
        %vm1000 = vcmp.ne.f32.partialorder %v999, 0.0
        %v1004 = vcombine.low %v982, %v990
        %v1006 = vunpack.c.l.s4 1966171168
        %v1007 = vunpack.c.0.s8 %v1006
        %v1008 = vlaneseq
        %v1009 = vshrl.u32 %v1008, 7
        %v1010 = vsub.s32 %v1007, %v1009
        %v1011 = vrot.slane %v1004, %v1010
        %v1013 = vunpack.c.l.s4 1966171168
        %v1014 = vunpack.c.0.s8 %v1013
        %v1015 = vlaneseq
        %v1016 = vshrl.u32 %v1015, 7
        %v1017 = vsub.s32 %v1014, %v1016
        %v1018 = vrot.slane %v998, %v1017
        %v1019 = vcombine.low %v1011, %v1018
        %v1021 = vunpack.c.l.s4 1966171168
        %v1022 = vunpack.c.0.s8 %v1021
        %v1023 = vlaneseq
        %v1024 = vshrl.u32 %v1023, 7
        %v1025 = vsub.s32 %v1022, %v1024
        %v1026 = vrot.slane %v1019, %v1025
        %1027 = vrot.lane.b32.xlu0 %v1026, 73
        %v1028 = vpop.permute.xlu0 %1027
        %v1029 = vrot.slane %v1028, 1
        %vm1030 = vcmask 596992
        %v1031 = vsel %vm1030, %v1028, %v1029
        %v1033 = vsel %vm1000, %v1031, 0.0
        %v1034 = vlaneseq
        %v1035 = vshrl.u32 %v1034, 7
        %v1036 = vsub.s32 4, %v1035
        %v1037 = vrot.slane %v962, %v1036
        %v1039 = vadd.f32 %v1033, %v1037
        %v1040 = vmul.f32 %v1039, 0.5
        %v1041 = vtanh.pop %v1040
        %v1042 = vadd.f32 %v1041, 1.0
        %v1043 = vmul.f32 %v1042, 0.5
        %v1044 = vadd.f32 %v1043, 1.0
        %v1046 = vlaneseq
        %v1047 = vshrl.u32 %v1046, 7
        %v1048 = vsub.s32 0, %v1047
        %v1049 = vrot.slane %v1044, %v1048
        %v1050 = vlaneseq
        %v1051 = vshrl.u32 %v1050, 7
        %v1052 = vsub.s32 1, %v1051
        %v1053 = vrot.slane %v1044, %v1052
        %v1054 = vcombine.low %v1049, %v1053
        %v1056 = vmul.f32 %v416, %v1054
        %1057 = vst [vmem:[%s379] sm:$0xff] %v1056
        %s1058 = sand.u32 %s213, 1
        %s1059 = scalar_lea.sflag [#allocation4], %s1058
        %s1060 = sand.u32 %s213, 1
        %s1061 = smul.addr %s1060, 8
        %s1062 = scalar_lea.vmem [#allocation5], %s1061
        // Predicated region
        $region49: #{tpu_custom_call.1} parent=43 // pred_check
          %p1063 = pneg %p223
        $region50: #{tpu_custom_call.1} parent=43 // pred_check_branch
          %1065 = sbr.rel (%p1063) target = $region52
        $region51: #{tpu_custom_call.1} parent=43 // pred_region
          %s1066 = smul.u32 2, %s28
          %s1068 = ssub.s32 128, 128
          %1069 = vsyncadd %s1059, %s1068
          %s1070 = smul.addr %s27, 4
          %s1071 = sadd.s32 %s1066, %s1070
          %s1072 = smul.addr %s1071, 64
          %s1073 = scalar_lea.hbm %s6, %s1072
          %s1075 = sshll.u32 %s1062, 4
          %s1076 = int_to_ptr.vmem [resolvable:$true] %s1075
          %1078 = dma.vmem_to_hbm [thread:$0]  %s1076, 128, %s1073, %s1059
        $region52: #{tpu_custom_call.1} parent=43 // pred_fallthru
          _
      $region44: #{tpu_custom_call.1} parent=5 // pred_fallthru
        _
      %p1079 = scmp.le.s32.totalorder 2, %s18
      // Predicated region
      $region53: #{tpu_custom_call.1} parent=5 // pred_check
        %p1080 = pneg %p1079
      $region54: #{tpu_custom_call.1} parent=5 // pred_check_branch
        %1082 = sbr.rel (%p1080) target = $region56
      $region55: #{tpu_custom_call.1} parent=5 // pred_region
        %s1083 = ssub.s32 %s18, 2
        // Predicated region
        $region57: #{tpu_custom_call.1} parent=55 // pred_check
          %p1084 = pneg %p229
        $region58: #{tpu_custom_call.1} parent=55 // pred_check_branch
          %1086 = sbr.rel (%p1084) target = $region60
        $region59: #{tpu_custom_call.1} parent=55 // pred_region
          %s1087 = sand.u32 %s214, 1
          %s1088 = scalar_lea.sflag [#allocation4], %s1087
          %s1089 = sand.u32 %s214, 1
          %s1090 = smul.addr %s1089, 8
          %s1091 = scalar_lea.vmem [#allocation5], %s1090
          %1092 = dma.done %s1088, 128
        $region60: #{tpu_custom_call.1} parent=55 // pred_fallthru
          _
      $region56: #{tpu_custom_call.1} parent=5 // pred_fallthru
        _
    $region6: #{tpu_custom_call.1} parent=1 // loop_footer
      %s22 = sadd.s32 1, %s18
    $region7: #{tpu_custom_call.1} parent=1 // loop_footer_branch
      %17 = sbr.rel target = $region3
    $region8: #{tpu_custom_call.1} parent=1 // loop_exit
      _
    %1093 = vsyncpa [#allocation3], 1
    %s1094 = scalar_lea.sflag [#allocation3], 1
    %1095 = vsyncpa %s1094, 1
    %1096 = vsyncpa [#allocation4], 1
    %s1097 = scalar_lea.sflag [#allocation4], 1
    %1098 = vsyncpa %s1097, 1

</llo_original>
